<compile_context>
chip_gen: v5e
topology: v5e:2x2
jax: 0.10.0
libtpu: 0.0.40
codegen_flags: <defaults>
</compile_context>

<pallas_src>
import jax
import jax.numpy as jnp
from jax.experimental import pallas as pl
from jax.experimental.pallas import tpu as pltpu


def actor_critic_kernel(x_ref, w1_ref, b1_ref, w2_ref, b2_ref, out_ref):
    # x_ref:  (bt, H)
    # w1_ref: (H, 2*H2)   = [wc1 | wa1]
    # b1_ref: (1, 2*H2)   = [bc1 | ba1]
    # w2_ref: (2*H2, P)   = blockdiag(wc2, wa2) padded to lane width P
    # b2_ref: (1, P)      = [bc2 | ba2 | 0...]
    # out_ref:(bt, P)     = [value | tanh(mu) | 0...]
    x = x_ref[...]

    # Fused layer 1: [critic_hidden | actor_hidden] in a single MXU pass.
    h = jnp.dot(x, w1_ref[...], preferred_element_type=jnp.float32) + b1_ref[...]
    h = jnp.maximum(h, 0.0)

    # Fused layer 2 (block-diagonal weights): y = [value | mu_pre | zero-pad].
    y = jnp.dot(h, w2_ref[...], preferred_element_type=jnp.float32) + b2_ref[...]

    # tanh (EUP) on the full vreg, then select: column 0 (value) passes through
    # untouched, all other lanes get tanh. No lane-sparse slicing in-kernel.
    col = jax.lax.broadcasted_iota(jnp.int32, y.shape, dimension=1)
    out_ref[...] = jnp.where(col == 0, y, jnp.tanh(y)).astype(out_ref.dtype)


def actor_critic_forward(x, params, *, batch_tile=512):
    """x: (B, H) float32. params: dict of per-layer weights.

    Returns (mu, std, value); Normal(mu, std) is the `dist` of the torch module.
    """
    B, H = x.shape
    H2 = params["wc1"].shape[1]
    A = params["wa2"].shape[1]
    P = max(128, 128 * pl.cdiv(1 + A, 128))  # lane-dense padded output width

    # --- pack parameters (wrapper-side; fused by XLA, negligible cost) ---
    W1 = jnp.concatenate([params["wc1"], params["wa1"]], axis=1)      # (H, 2*H2)
    B1 = jnp.concatenate([params["bc1"], params["ba1"]], axis=1)      # (1, 2*H2)
    W2 = jnp.zeros((2 * H2, P), jnp.float32)
    W2 = W2.at[:H2, 0:1].set(params["wc2"])                           # critic -> col 0
    W2 = W2.at[H2:, 1:1 + A].set(params["wa2"])                       # actor  -> cols 1..A
    B2 = jnp.zeros((1, P), jnp.float32)
    B2 = B2.at[:, 0:1].set(params["bc2"])
    B2 = B2.at[:, 1:1 + A].set(params["ba2"])

    # batch_tile is kept a multiple of 8 (sublane-aligned) when tiling occurs;
    # if B <= batch_tile the single block equals the full array (always legal).
    bt = B if B <= batch_tile else batch_tile
    grid = (pl.cdiv(B, bt),)

    out = pl.pallas_call(
        actor_critic_kernel,
        out_shape=jax.ShapeDtypeStruct((B, P), jnp.float32),
        grid_spec=pltpu.PrefetchScalarGridSpec(
            num_scalar_prefetch=0,
            grid=grid,
            in_specs=[
                pl.BlockSpec((bt, H), lambda i: (i, 0)),          # x: tiled over batch
                pl.BlockSpec((H, 2 * H2), lambda i: (0, 0)),      # fused W1 (resident)
                pl.BlockSpec((1, 2 * H2), lambda i: (0, 0)),      # fused b1
                pl.BlockSpec((2 * H2, P), lambda i: (0, 0)),      # block-diag W2
                pl.BlockSpec((1, P), lambda i: (0, 0)),           # fused b2
            ],
            out_specs=pl.BlockSpec((bt, P), lambda i: (i, 0)),    # lane-dense slab
        ),
        compiler_params=pltpu.CompilerParams(
            dimension_semantics=("parallel",),  # batch axis -> megacore-shardable
        ),
    )(x, W1, B1, W2, B2)

    value = out[:, 0:1]
    mu = out[:, 1:1 + A]
    # std = exp(log_std): batch-independent, hoisted out of the kernel.
    std = jnp.broadcast_to(jnp.exp(params["log_std"]), (B, A))
    return mu, std, value


def make_params(key, hidden_size, num_outputs, std=0.0):
    """Deterministic synthetic parameters.

    Weights stored pre-transposed: (in_features, out_features).
    nn.Linear(hidden_size, hidden_size / 2) is interpreted as hidden_size // 2.
    """
    H = hidden_size
    H2 = H // 2
    A = num_outputs

    ks = jax.random.split(key, 8)

    def lin(kw, kb, fan_in, fan_out):
        bound = 1.0 / jnp.sqrt(fan_in)
        w = jax.random.uniform(kw, (fan_in, fan_out), jnp.float32, -bound, bound)
        b = jax.random.uniform(kb, (1, fan_out), jnp.float32, -bound, bound)
        return w, b

    wc1, bc1 = lin(ks[0], ks[1], H, H2)
    wc2, bc2 = lin(ks[2], ks[3], H2, 1)
    wa1, ba1 = lin(ks[4], ks[5], H, H2)
    wa2, ba2 = lin(ks[6], ks[7], H2, A)

    return dict(
        wc1=wc1, bc1=bc1, wc2=wc2, bc2=bc2,
        wa1=wa1, ba1=ba1, wa2=wa2, ba2=ba2,
        log_std=jnp.ones((1, A), jnp.float32) * std,  # self.log_std
    )


def actor_critic_ref(x, p):
    """Pure-JAX reference (unfused) for verification."""
    h_c = jnp.maximum(x @ p["wc1"] + p["bc1"], 0.0)
    value = h_c @ p["wc2"] + p["bc2"]
    h_a = jnp.maximum(x @ p["wa1"] + p["ba1"], 0.0)
    mu = jnp.tanh(h_a @ p["wa2"] + p["ba2"])
    std = jnp.broadcast_to(jnp.exp(p["log_std"]), mu.shape)
    return mu, std, value


def _check(x, params, **kw):
    mu, std, value = actor_critic_forward(x, params, **kw)
    jax.block_until_ready((mu, std, value))
    mu_r, std_r, value_r = actor_critic_ref(x, params)
    assert jnp.allclose(mu, mu_r, atol=1e-5, rtol=1e-5)
    assert jnp.allclose(std, std_r, atol=1e-5, rtol=1e-5)
    assert jnp.allclose(value, value_r, atol=1e-5, rtol=1e-5)


if __name__ == "__main__":
    key = jax.random.PRNGKey(0)
    k_x, k_x2, k_p = jax.random.split(key, 3)

    batch = 2
    hidden_size = 32
    num_outputs = 4

    params = make_params(k_p, hidden_size, num_outputs, std=0.0)

    # lstm_out: (batch, hidden_size)  -- primary small-shape check (grid = 1).
    x = jax.random.normal(k_x, (batch, hidden_size), jnp.float32)
    _check(x, params)

    # Secondary check exercising the tiled / pipelined batch path (grid = 2).
    x2 = jax.random.normal(k_x2, (256, hidden_size), jnp.float32)
    _check(x2, params, batch_tile=128)

    # dist = Normal(mu, std) is represented by returning (mu, std) directly.
    print("KERNEL_OK")
</pallas_src>

<mosaic_0001>
module attributes {stable_mosaic.version = 11 : i64} {
  func.func @actor_critic_kernel(%arg0: i32, %arg1: memref<2x32xf32, #tpu.memory_space<vmem>>, %arg2: memref<32x32xf32, #tpu.memory_space<vmem>>, %arg3: memref<1x32xf32, #tpu.memory_space<vmem>>, %arg4: memref<32x128xf32, #tpu.memory_space<vmem>>, %arg5: memref<1x128xf32, #tpu.memory_space<vmem>>, %arg6: memref<2x128xf32, #tpu.memory_space<vmem>>) attributes {dimension_semantics = [#tpu.dimension_semantics<parallel>], iteration_bounds = array<i64: 1>, scalar_prefetch = 0 : i64, scratch_operands = 0 : i64, tpu.core_type = #tpu.core_type<tc>, window_params = [{transform_indices = @transform_0, window_bounds = array<i64: 2, 32>}, {pipeline_mode = #tpu.pipeline_mode<synchronous>, transform_indices = @transform_1, window_bounds = array<i64: 32, 32>}, {pipeline_mode = #tpu.pipeline_mode<synchronous>, transform_indices = @transform_2, window_bounds = array<i64: 1, 32>}, {pipeline_mode = #tpu.pipeline_mode<synchronous>, transform_indices = @transform_3, window_bounds = array<i64: 32, 128>}, {pipeline_mode = #tpu.pipeline_mode<synchronous>, transform_indices = @transform_4, window_bounds = array<i64: 1, 128>}, {transform_indices = @transform_5, window_bounds = array<i64: 2, 128>}]} {
    %c0 = arith.constant 0 : index
    %c0_0 = arith.constant 0 : index
    %0 = vector.load %arg1[%c0, %c0_0] : memref<2x32xf32, #tpu.memory_space<vmem>>, vector<2x32xf32>
    %c0_1 = arith.constant 0 : index
    %c0_2 = arith.constant 0 : index
    %1 = vector.load %arg2[%c0_1, %c0_2] : memref<32x32xf32, #tpu.memory_space<vmem>>, vector<32x32xf32>
    %cst = arith.constant dense<0.000000e+00> : vector<2x32xf32>
    %2 = tpu.matmul %0, %1, %cst {dimension_numbers = #tpu.dot_dimension_numbers<[1], [0], [0], [1], [0, 0, 1, 1], [], []>} : vector<2x32xf32>, vector<32x32xf32>, vector<2x32xf32> -> vector<2x32xf32>
    %c0_3 = arith.constant 0 : index
    %c0_4 = arith.constant 0 : index
    %3 = vector.load %arg3[%c0_3, %c0_4] : memref<1x32xf32, #tpu.memory_space<vmem>>, vector<1x32xf32>
    %4 = vector.broadcast %3 : vector<1x32xf32> to vector<2x32xf32>
    %5 = arith.addf %2, %4 : vector<2x32xf32>
    %cst_5 = arith.constant 0.000000e+00 : f32
    %6 = vector.broadcast %cst_5 : f32 to vector<2x32xf32>
    %7 = arith.maximumf %5, %6 : vector<2x32xf32>
    %c0_6 = arith.constant 0 : index
    %c0_7 = arith.constant 0 : index
    %8 = vector.load %arg4[%c0_6, %c0_7] : memref<32x128xf32, #tpu.memory_space<vmem>>, vector<32x128xf32>
    %cst_8 = arith.constant dense<0.000000e+00> : vector<2x128xf32>
    %9 = tpu.matmul %7, %8, %cst_8 {dimension_numbers = #tpu.dot_dimension_numbers<[1], [0], [0], [1], [0, 0, 1, 1], [], []>} : vector<2x32xf32>, vector<32x128xf32>, vector<2x128xf32> -> vector<2x128xf32>
    %c0_9 = arith.constant 0 : index
    %c0_10 = arith.constant 0 : index
    %10 = vector.load %arg5[%c0_9, %c0_10] : memref<1x128xf32, #tpu.memory_space<vmem>>, vector<1x128xf32>
    %11 = vector.broadcast %10 : vector<1x128xf32> to vector<2x128xf32>
    %12 = arith.addf %9, %11 : vector<2x128xf32>
    %13 = tpu.iota {dimensions = array<i32: 1>} : vector<2x128xi32>
    %c0_i32 = arith.constant 0 : i32
    %14 = vector.broadcast %c0_i32 : i32 to vector<2x128xi32>
    %15 = arith.cmpi eq, %13, %14 : vector<2x128xi32>
    %16 = math.tanh %12 : vector<2x128xf32>
    %17 = arith.select %15, %12, %16 : vector<2x128xi1>, vector<2x128xf32>
    %c0_11 = arith.constant 0 : index
    %c0_12 = arith.constant 0 : index
    %18 = vector.load %arg6[%c0_11, %c0_12] : memref<2x128xf32, #tpu.memory_space<vmem>>, vector<2x128xf32>
    tpu.vector_store %arg6[%c0_11, %c0_12], %17 {strides = array<i32>} : memref<2x128xf32, #tpu.memory_space<vmem>>, vector<2x128xf32>,
    return
  }
  func.func @transform_0(%arg0: i32) -> (i32, i32) {
    %c0_i32 = arith.constant 0 : i32
    %c0_i32_0 = arith.constant 0 : i32
    return %arg0, %c0_i32 : i32, i32
  }
  func.func @transform_1(%arg0: i32) -> (i32, i32) {
    %c0_i32 = arith.constant 0 : i32
    %c0_i32_0 = arith.constant 0 : i32
    %c0_i32_1 = arith.constant 0 : i32
    return %c0_i32, %c0_i32_0 : i32, i32
  }
  func.func @transform_2(%arg0: i32) -> (i32, i32) {
    %c0_i32 = arith.constant 0 : i32
    %c0_i32_0 = arith.constant 0 : i32
    %c0_i32_1 = arith.constant 0 : i32
    return %c0_i32, %c0_i32_0 : i32, i32
  }
  func.func @transform_3(%arg0: i32) -> (i32, i32) {
    %c0_i32 = arith.constant 0 : i32
    %c0_i32_0 = arith.constant 0 : i32
    %c0_i32_1 = arith.constant 0 : i32
    return %c0_i32, %c0_i32_0 : i32, i32
  }
  func.func @transform_4(%arg0: i32) -> (i32, i32) {
    %c0_i32 = arith.constant 0 : i32
    %c0_i32_0 = arith.constant 0 : i32
    %c0_i32_1 = arith.constant 0 : i32
    return %c0_i32, %c0_i32_0 : i32, i32
  }
  func.func @transform_5(%arg0: i32) -> (i32, i32) {
    %c0_i32 = arith.constant 0 : i32
    %c0_i32_0 = arith.constant 0 : i32
    return %arg0, %c0_i32 : i32, i32
  }
}

</mosaic_0001>

<llo_original>
// kernel: tpu_custom_call.1
$region0: #{tpu_custom_call.1}
  #allocation0 [shape = 'u32[]', space=smem, size = 0x4, offset = 0x4, fixed_abs, tag = 'smem constant byte address 0x4 - core index']
  #allocation1 [shape = 'u32[72,128]{1,0:T(1,128)}', space=vmem, size = 0x9000, scoped, tag = 'internal scratch']
  %s0 = inlined_call_operand.hbm [shape: f32[2,32], index: 0, kind: input, shape index: {}]
  %s1 = inlined_call_operand.hbm [shape: f32[32,32], index: 1, kind: input, shape index: {}]
  %s2 = inlined_call_operand.vmem [shape: f32[1,32], index: 2, kind: input, shape index: {}]
  %s3 = inlined_call_operand.hbm [shape: f32[32,128], index: 3, kind: input, shape index: {}]
  %s4 = inlined_call_operand.vmem [shape: f32[1,128], index: 4, kind: input, shape index: {}]
  %s5 = inlined_call_operand.hbm [shape: f32[2,128], index: 5, kind: output, shape index: {}]
  %s6 = sld [smem:[#allocation0]]
  $region42: #{tpu_custom_call.1} parent=0
    _
  %s8 = ssub.s32 1, %s6
  %s9 = scalar_select 0, %s8, %s6
  $region1: #{tpu_custom_call.1} parent=0
    #allocation2 [shape = 'u8[1024]{0}', space=vmem, size = 0x400, scoped, tag = 'input window, operand 0, single buffered']
    #allocation3 [shape = 's32[1]{0}', space=sflag, size = 0x4, scoped, tag = 'scoped memory for tpu_custom_call.1']
    #allocation4 [shape = 's32[1]{0}', space=sflag, size = 0x4, scoped, tag = 'scoped memory for tpu_custom_call.1']
    #allocation5 [shape = 'u8[16384]{0}', space=vmem, size = 0x4000, scoped, tag = 'input window, operand 1, single buffered']
    #allocation6 [shape = 's32[1]{0}', space=sflag, size = 0x4, scoped, tag = 'scoped memory for tpu_custom_call.1']
    #allocation7 [shape = 'u8[16384]{0}', space=vmem, size = 0x4000, scoped, tag = 'input window, operand 3, single buffered']
    #allocation8 [shape = 'u8[1024]{0}', space=vmem, size = 0x400, scoped, tag = 'output window, operand 0, single buffered']
    %10 = vsyncpa [#allocation3], 0
    %11 = vsyncpa [#allocation6], 0
    %12 = vsyncpa [#allocation4], 0
    // Predicated region
    $region2: #{tpu_custom_call.1} parent=1 // pred_check
      _
    $region3: #{tpu_custom_call.1} parent=1 // pred_check_branch
      %14 = sbr.rel (0) target = $region5
    $region4: #{tpu_custom_call.1} parent=1 // pred_region
      %16 = vsyncadd [#allocation3], 0
      %s18 = sshll.u32 %s0, 4
      %s19 = int_to_ptr.hbm [resolvable:$true] %s18
      %s20 = sshll.u32 [#allocation2], 4
      %s21 = int_to_ptr.vmem [resolvable:$true] %s20
      %23 = dma.hbm_to_vmem [thread:$0]  %s19, 32, %s21, [#allocation3]
    $region5: #{tpu_custom_call.1} parent=1 // pred_fallthru
      _
    // Predicated region
    $region6: #{tpu_custom_call.1} parent=1 // pred_check
      _
    $region7: #{tpu_custom_call.1} parent=1 // pred_check_branch
      %25 = sbr.rel (0) target = $region9
    $region8: #{tpu_custom_call.1} parent=1 // pred_region
      %27 = vsyncadd [#allocation6], 0
      %s28 = sshll.u32 %s1, 4
      %s29 = int_to_ptr.hbm [resolvable:$true] %s28
      %s30 = sshll.u32 [#allocation5], 4
      %s31 = int_to_ptr.vmem [resolvable:$true] %s30
      %36 = dma.hbm_to_vmem [thread:$0]  %s29, 512, %s31, [#allocation6], 128, 128, 8
    $region9: #{tpu_custom_call.1} parent=1 // pred_fallthru
      _
    // Predicated region
    $region10: #{tpu_custom_call.1} parent=1 // pred_check
      _
    $region11: #{tpu_custom_call.1} parent=1 // pred_check_branch
      %38 = sbr.rel (0) target = $region13
    $region12: #{tpu_custom_call.1} parent=1 // pred_region
      _
    $region13: #{tpu_custom_call.1} parent=1 // pred_fallthru
      _
    // Predicated region
    $region14: #{tpu_custom_call.1} parent=1 // pred_check
      _
    $region15: #{tpu_custom_call.1} parent=1 // pred_check_branch
      %40 = sbr.rel (0) target = $region17
    $region16: #{tpu_custom_call.1} parent=1 // pred_region
      %42 = vsyncadd [#allocation6], 0
      %s43 = sshll.u32 %s3, 4
      %s44 = int_to_ptr.hbm [resolvable:$true] %s43
      %s45 = sshll.u32 [#allocation7], 4
      %s46 = int_to_ptr.vmem [resolvable:$true] %s45
      %51 = dma.hbm_to_vmem [thread:$0]  %s44, 512, %s46, [#allocation6], 128, 128, 8
    $region17: #{tpu_custom_call.1} parent=1 // pred_fallthru
      _
    // Predicated region
    $region18: #{tpu_custom_call.1} parent=1 // pred_check
      _
    $region19: #{tpu_custom_call.1} parent=1 // pred_check_branch
      %53 = sbr.rel (0) target = $region21
    $region20: #{tpu_custom_call.1} parent=1 // pred_region
      _
    $region21: #{tpu_custom_call.1} parent=1 // pred_fallthru
      _
    // Predicated region
    $region22: #{tpu_custom_call.1} parent=1 // pred_check
      _
    $region23: #{tpu_custom_call.1} parent=1 // pred_check_branch
      %55 = sbr.rel (0) target = $region25
    $region24: #{tpu_custom_call.1} parent=1 // pred_region
      %57 = dma.done [#allocation3], 32
    $region25: #{tpu_custom_call.1} parent=1 // pred_fallthru
      _
    // Predicated region
    $region26: #{tpu_custom_call.1} parent=1 // pred_check
      _
    $region27: #{tpu_custom_call.1} parent=1 // pred_check_branch
      %59 = sbr.rel (0) target = $region29
    $region28: #{tpu_custom_call.1} parent=1 // pred_region
      %61 = dma.done [#allocation6], 512
    $region29: #{tpu_custom_call.1} parent=1 // pred_fallthru
      _
    // Predicated region
    $region30: #{tpu_custom_call.1} parent=1 // pred_check
      _
    $region31: #{tpu_custom_call.1} parent=1 // pred_check_branch
      %63 = sbr.rel (0) target = $region33
    $region32: #{tpu_custom_call.1} parent=1 // pred_region
      %65 = dma.done [#allocation6], 512
    $region33: #{tpu_custom_call.1} parent=1 // pred_fallthru
      _
    %v66 = vld [vmem:[#allocation2] sm:$0x3]
    %v67 = vld [vmem:[#allocation5] sm:$0xff]
    %v68 = vld [vmem:[#allocation5 + $0x8] sm:$0xff]
    %v69 = vld [vmem:[#allocation5 + $0x10] sm:$0xff]
    %v70 = vld [vmem:[#allocation5 + $0x18] sm:$0xff]
    %v71 = vld [vmem:[%s2] sm:$0x1]
    %v73 = vperm.slane %v71, 0
    %vm75 = vcmask 261120
    %v77 = vsel %vm75, %v66, 0
    %79 = vmatpush.msra.mxu0 0.0
    %80 = vmatpush.msra.mxu0 0.0
    %81 = vmatpush.msra.mxu0 0.0
    %82 = vmatpush.msra.mxu0 0.0
    %83 = vmatpush.msra.mxu0 0.0
    %84 = vmatpush.msra.mxu0 0.0
    %85 = vmatpush.msra.mxu0 0.0
    %86 = vmatpush.msra.mxu0 0.0
    %87 = vmatpush.msra.mxu0 0.0
    %88 = vmatpush.msra.mxu0 0.0
    %89 = vmatpush.msra.mxu0 0.0
    %90 = vmatpush.msra.mxu0 0.0
    %91 = vmatpush.msra.mxu0 %v70
    %92 = vmatpush.msra.mxu0 %v69
    %93 = vmatpush.msra.mxu0 %v68
    %94 = vmatpush.msra.mxu0 %v67
    %95 = vmatmul.f32.gmra.mxu0 %v77
    %v96 = vpop.f32.mrf.mxu0
    %v97 = vadd.f32 %v73, %v96
    %98 = vdwg.mxu0
    %v99 = vmax.f32 %v97, 0.0
    %v100 = vld [vmem:[#allocation7] sm:$0xff]
    %v101 = vld [vmem:[#allocation7 + $0x8] sm:$0xff]
    %v102 = vld [vmem:[#allocation7 + $0x10] sm:$0xff]
    %v103 = vld [vmem:[#allocation7 + $0x18] sm:$0xff]
    %v104 = vld [vmem:[%s4] sm:$0x1]
    %v106 = vperm.slane %v104, 0
    %v109 = vsel %vm75, %v99, 0
    %111 = vmatpush.msra.mxu0 0.0
    %112 = vmatpush.msra.mxu0 0.0
    %113 = vmatpush.msra.mxu0 0.0
    %114 = vmatpush.msra.mxu0 0.0
    %115 = vmatpush.msra.mxu0 0.0
    %116 = vmatpush.msra.mxu0 0.0
    %117 = vmatpush.msra.mxu0 0.0
    %118 = vmatpush.msra.mxu0 0.0
    %119 = vmatpush.msra.mxu0 0.0
    %120 = vmatpush.msra.mxu0 0.0
    %121 = vmatpush.msra.mxu0 0.0
    %122 = vmatpush.msra.mxu0 0.0
    %123 = vmatpush.msra.mxu0 %v103
    %124 = vmatpush.msra.mxu0 %v102
    %125 = vmatpush.msra.mxu0 %v101
    %126 = vmatpush.msra.mxu0 %v100
    %127 = vmatmul.f32.gmra.mxu0 %v109
    %v128 = vpop.f32.mrf.mxu0
    %v129 = vadd.f32 %v106, %v128
    %130 = vdwg.mxu0
    %v131 = vlaneseq
    %v132 = vand.u32 %v131, 127
    %vm133 = vcmp.eq.s32.totalorder %v132, 0
    %v134 = vtanh.pop %v129
    %v135 = vsel %vm133, %v129, %v134
    %136 = vst [vmem:[#allocation8] sm:$0x3] %v135
    // Predicated region
    $region34: #{tpu_custom_call.1} parent=1 // pred_check
      _
    $region35: #{tpu_custom_call.1} parent=1 // pred_check_branch
      %138 = sbr.rel (0) target = $region37
    $region36: #{tpu_custom_call.1} parent=1 // pred_region
      %140 = vsyncadd [#allocation4], 0
      %s142 = sshll.u32 [#allocation8], 4
      %s143 = int_to_ptr.vmem [resolvable:$true] %s142
      %s144 = sshll.u32 %s5, 4
      %s145 = int_to_ptr.hbm [resolvable:$true] %s144
      %147 = dma.vmem_to_hbm [thread:$0]  %s143, 32, %s145, [#allocation4]
    $region37: #{tpu_custom_call.1} parent=1 // pred_fallthru
      _
    // Predicated region
    $region38: #{tpu_custom_call.1} parent=1 // pred_check
      _
    $region39: #{tpu_custom_call.1} parent=1 // pred_check_branch
      %149 = sbr.rel (0) target = $region41
    $region40: #{tpu_custom_call.1} parent=1 // pred_region
      %151 = dma.done [#allocation4], 32
    $region41: #{tpu_custom_call.1} parent=1 // pred_fallthru
      _
    %152 = vsyncpa [#allocation3], 1
    %153 = vsyncpa [#allocation6], 1
    %154 = vsyncpa [#allocation4], 1

</llo_original>
